<compile_context>
chip_gen: v7x
topology: tpu7x:2x2x1
jax: 0.10.0
libtpu: 0.0.40
codegen_flags: <defaults>
</compile_context>

<pallas_src>
import jax
import jax.numpy as jnp
from jax.experimental import pallas as pl
from jax.experimental.pallas import tpu as pltpu


def _projector_kernel(x_ref, w_ref, b_ref, o_ref):
    # x_ref: (TILE_B, F) VMEM tile (streamed, double-buffered)
    # w_ref: (1, F)      VMEM tile, lane-major, same block every step -> resident
    # b_ref: (1,)        SMEM scalar
    # o_ref: (1, 1, TILE_B) VMEM tile (lane-dense output row)
    x = x_ref[...]
    w = w_ref[...]
    # VPU multiply + XLU lane-reduce; exact f32, VALU/XLU slots are otherwise
    # idle so the HBM stream of x stays the binding resource.
    y = jnp.sum(x * w, axis=-1)            # (TILE_B,)
    o_ref[...] = (y + b_ref[0]).reshape(o_ref.shape).astype(o_ref.dtype)


def _pick_tile_b(B: int, F: int, itemsize: int,
                 target_bytes: int = 8 * 1024 * 1024) -> int:
    """Batch tile: ~8 MiB of x per buffer, sublane/128-row aligned, <= B."""
    rows = max(8, target_bytes // max(1, F * itemsize))
    rows = (rows // 128) * 128 if rows >= 128 else (rows // 8) * 8
    if rows < B:
        return int(rows)                   # many tiles; 8/128-aligned
    # A single tile would cover the whole batch.
    if B >= 16:
        # Split into at least two 8-aligned tiles so the "parallel" axis gives
        # both v7x TensorCores work (never below 8 rows / sublane alignment).
        half = -(-((B + 1) // 2) // 8) * 8
        return int(half)                   # guaranteed <= B for B >= 16
    return int(B)                          # tiny batch: full-dim block


def projector_forward(x, weight, bias):
    """
    x:      (B, F) float32
    weight: (1, F) float32   (torch Linear layout)
    bias:   (1,)   float32
    returns (B,)   float32   == linear(x).squeeze(-1)
    """
    B, F = x.shape
    itemsize = jnp.dtype(x.dtype).itemsize

    TILE_B = _pick_tile_b(B, F, itemsize)
    num_tiles = pl.cdiv(B, TILE_B)

    w = weight.reshape(1, F)               # lane-major resident weight
    b1 = bias.reshape(1).astype(jnp.float32)

    # VMEM budget: 2 x-tile buffers (double-buffered stream) + 1 tile-sized
    # product temporary for the VPU reduce + small output/weight buffers.
    x_tile_bytes = TILE_B * F * itemsize
    vmem_need = 3 * x_tile_bytes + 4 * TILE_B * itemsize + 2 * F * itemsize + (2 << 20)
    vmem_limit = int(min(48 * 1024 * 1024, max(vmem_need, 16 * 1024 * 1024)))

    out = pl.pallas_call(
        _projector_kernel,
        out_shape=jax.ShapeDtypeStruct((num_tiles, 1, TILE_B), x.dtype),
        grid_spec=pltpu.PrefetchScalarGridSpec(
            num_scalar_prefetch=0,
            grid=(num_tiles,),
            in_specs=[
                # x: streamed over the (possibly ragged) batch axis.
                pl.BlockSpec((TILE_B, F), lambda i: (i, 0)),
                # weight: same block every step -> stays resident in VMEM.
                pl.BlockSpec((1, F), lambda i: (0, 0)),
                # bias: tiny scalar, lives in SMEM (no per-step VMEM DMA).
                pl.BlockSpec(memory_space=pltpu.MemorySpace.SMEM),
            ],
            # Lane-dense output: one full (1, 1, TILE_B) row per grid step.
            out_specs=pl.BlockSpec((1, 1, TILE_B), lambda i: (i, 0, 0)),
        ),
        compiler_params=pltpu.CompilerParams(
            # Batch tiles are independent -> shard across TensorCores on v7x.
            dimension_semantics=("parallel",),
            vmem_limit_bytes=vmem_limit,
        ),
        cost_estimate=pl.CostEstimate(
            flops=2 * B * F,
            bytes_accessed=itemsize * (B * F + F + num_tiles * TILE_B),
            transcendentals=0,
        ),
    )(x, w, b1)

    # (num_tiles, 1, TILE_B) -> (B,): squeeze(-1) + drop ragged tail.
    return out.reshape(num_tiles * TILE_B)[:B]


if __name__ == "__main__":
    key = jax.random.PRNGKey(0)
    k_x, k_w, k_b, k_x2 = jax.random.split(key, 4)

    # Small shapes consistent with the module: Projector(input_size=32), batch=8.
    batch = 8
    input_size = 32

    bound = 1.0 / (input_size ** 0.5)
    weight = jax.random.uniform(k_w, (1, input_size), jnp.float32, -bound, bound)
    bias = jax.random.uniform(k_b, (1,), jnp.float32, -bound, bound)
    x = jax.random.normal(k_x, (batch, input_size), jnp.float32)

    y = jax.block_until_ready(projector_forward(x, weight, bias))
    y_ref = (x @ weight.T + bias)[:, 0]
    assert y.shape == (batch,)
    assert jnp.allclose(y, y_ref, atol=1e-5, rtol=1e-5)

    # Exercise the ragged multi-tile path (B not a multiple of TILE_B, 2 tiles).
    B2, F2 = 300, 96
    bound2 = 1.0 / (F2 ** 0.5)
    w2 = jax.random.uniform(k_w, (1, F2), jnp.float32, -bound2, bound2)
    b2 = jax.random.uniform(k_b, (1,), jnp.float32, -bound2, bound2)
    x2 = jax.random.normal(k_x2, (B2, F2), jnp.float32)
    y2 = jax.block_until_ready(projector_forward(x2, w2, b2))
    y2_ref = (x2 @ w2.T + b2)[:, 0]
    assert y2.shape == (B2,)
    assert jnp.allclose(y2, y2_ref, atol=1e-4, rtol=1e-4)

    print("KERNEL_OK")
</pallas_src>

<mosaic_0001>
module attributes {stable_mosaic.version = 11 : i64} {
  func.func @_projector_kernel(%arg0: i32, %arg1: memref<8x32xf32, #tpu.memory_space<vmem>>, %arg2: memref<1x32xf32, #tpu.memory_space<vmem>>, %arg3: memref<1xf32, #tpu.memory_space<smem>>, %arg4: memref<1x1x8xf32, #tpu.memory_space<vmem>>) attributes {dimension_semantics = [#tpu.dimension_semantics<parallel>], iteration_bounds = array<i64: 1>, scalar_prefetch = 0 : i64, scratch_operands = 0 : i64, tpu.core_type = #tpu.core_type<tc>, window_params = [{transform_indices = @transform_0, window_bounds = array<i64: 8, 32>}, {pipeline_mode = #tpu.pipeline_mode<synchronous>, transform_indices = @transform_1, window_bounds = array<i64: 1, 32>}, {transform_indices = @transform_2, window_bounds = array<i64: 1>}, {transform_indices = @transform_3, window_bounds = array<i64: 1, 1, 8>}]} {
    %c0 = arith.constant 0 : index
    %c0_0 = arith.constant 0 : index
    %0 = vector.load %arg1[%c0, %c0_0] : memref<8x32xf32, #tpu.memory_space<vmem>>, vector<8x32xf32>
    %c0_1 = arith.constant 0 : index
    %c0_2 = arith.constant 0 : index
    %1 = vector.load %arg2[%c0_1, %c0_2] : memref<1x32xf32, #tpu.memory_space<vmem>>, vector<1x32xf32>
    %2 = vector.broadcast %1 : vector<1x32xf32> to vector<8x32xf32>
    %3 = arith.mulf %0, %2 : vector<8x32xf32>
    %cst = arith.constant dense<0.000000e+00> : vector<8xf32>
    %4 = vector.multi_reduction <add>, %3, %cst [1] : vector<8x32xf32> to vector<8xf32>
    %c0_3 = arith.constant 0 : index
    %5 = memref.load %arg3[%c0_3] : memref<1xf32, #tpu.memory_space<smem>>
    %6 = vector.broadcast %5 : f32 to vector<8xf32>
    %7 = arith.addf %4, %6 : vector<8xf32>
    %8 = vector.shape_cast %7 : vector<8xf32> to vector<1x1x8xf32>
    %c0_4 = arith.constant 0 : index
    %c0_5 = arith.constant 0 : index
    %c0_6 = arith.constant 0 : index
    %9 = vector.load %arg4[%c0_4, %c0_5, %c0_6] : memref<1x1x8xf32, #tpu.memory_space<vmem>>, vector<1x1x8xf32>
    tpu.vector_store %arg4[%c0_4, %c0_5, %c0_6], %8 {strides = array<i32>} : memref<1x1x8xf32, #tpu.memory_space<vmem>>, vector<1x1x8xf32>,
    return
  }
  func.func @transform_0(%arg0: i32) -> (i32, i32) {
    %c0_i32 = arith.constant 0 : i32
    %c0_i32_0 = arith.constant 0 : i32
    return %arg0, %c0_i32 : i32, i32
  }
  func.func @transform_1(%arg0: i32) -> (i32, i32) {
    %c0_i32 = arith.constant 0 : i32
    %c0_i32_0 = arith.constant 0 : i32
    %c0_i32_1 = arith.constant 0 : i32
    return %c0_i32, %c0_i32_0 : i32, i32
  }
  func.func @transform_2(%arg0: i32) -> i32 {
    %c0_i32 = arith.constant 0 : i32
    %c0_i32_0 = arith.constant 0 : i32
    return %c0_i32 : i32
  }
  func.func @transform_3(%arg0: i32) -> (i32, i32, i32) {
    %c0_i32 = arith.constant 0 : i32
    %c0_i32_0 = arith.constant 0 : i32
    %c0_i32_1 = arith.constant 0 : i32
    return %arg0, %c0_i32, %c0_i32_0 : i32, i32, i32
  }
}

</mosaic_0001>

<llo_original>
// kernel: tpu_custom_call.1
$region0: #{tpu_custom_call.1}
  #allocation0 [shape = 'u32[]', space=smem, size = 0x4, offset = 0x4, fixed_abs, tag = 'smem constant byte address 0x4 - core index']
  #allocation1 [shape = 'u32[144,128]{1,0:T(1,128)}', space=vmem, size = 0x12000, scoped, tag = 'internal scratch']
  #allocation2 [shape = 'f32[1]{0:T(128)S(6)}', space=smem, size = 0x200, scoped, tag = 'scoped memory for tpu_custom_call.1']
  %s0 = inlined_call_operand.hbm [shape: f32[8,32], index: 0, kind: input, shape index: {}]
  %s1 = inlined_call_operand.vmem [shape: f32[1,32], index: 1, kind: input, shape index: {}]
  %s2 = inlined_call_operand.<no memory space> [shape: f32[1], index: 2, kind: input, shape index: {}]
  %s3 = inlined_call_operand.hbm [shape: f32[1,1,8], index: 3, kind: output, shape index: {}]
  %s4 = sld [smem:[#allocation0]]
  $region26: #{tpu_custom_call.1} parent=0
    _
  %s6 = ssub.s32 1, %s4
  %s7 = scalar_select 0, %s6, %s4
  %8 = sst [smem:[#allocation2]] %s2
  $region1: #{tpu_custom_call.1} parent=0
    #allocation3 [shape = 'u8[4096]{0}', space=vmem, size = 0x1000, scoped, tag = 'input window, operand 0, single buffered']
    #allocation4 [shape = 's32[1]{0}', space=sflag, size = 0x4, scoped, tag = 'scoped memory for tpu_custom_call.1']
    #allocation5 [shape = 's32[1]{0}', space=sflag, size = 0x4, scoped, tag = 'scoped memory for tpu_custom_call.1']
    #allocation6 [shape = 'u8[512]{0}', space=vmem, size = 0x400, scoped, tag = 'output window, operand 0, single buffered']
    %9 = vsyncpa [#allocation4], 0
    %10 = vsyncpa [#allocation5], 0
    // Predicated region
    $region2: #{tpu_custom_call.1} parent=1 // pred_check
      _
    $region3: #{tpu_custom_call.1} parent=1 // pred_check_branch
      %12 = sbr.rel (0) target = $region5
    $region4: #{tpu_custom_call.1} parent=1 // pred_region
      %s14 = ssub.s32 128, 128
      %15 = vsyncadd [#allocation4], %s14
      %s17 = sshll.u32 [#allocation3], 4
      %s18 = int_to_ptr.vmem [resolvable:$true] %s17
      %20 = dma.hbm_to_vmem [thread:$0]  %s0, 128, %s18, [#allocation4]
    $region5: #{tpu_custom_call.1} parent=1 // pred_fallthru
      _
    // Predicated region
    $region6: #{tpu_custom_call.1} parent=1 // pred_check
      _
    $region7: #{tpu_custom_call.1} parent=1 // pred_check_branch
      %22 = sbr.rel (0) target = $region9
    $region8: #{tpu_custom_call.1} parent=1 // pred_region
      _
    $region9: #{tpu_custom_call.1} parent=1 // pred_fallthru
      _
    // Predicated region
    $region10: #{tpu_custom_call.1} parent=1 // pred_check
      _
    $region11: #{tpu_custom_call.1} parent=1 // pred_check_branch
      %24 = sbr.rel (0) target = $region13
    $region12: #{tpu_custom_call.1} parent=1 // pred_region
      _
    $region13: #{tpu_custom_call.1} parent=1 // pred_fallthru
      _
    // Predicated region
    $region14: #{tpu_custom_call.1} parent=1 // pred_check
      _
    $region15: #{tpu_custom_call.1} parent=1 // pred_check_branch
      %26 = sbr.rel (0) target = $region17
    $region16: #{tpu_custom_call.1} parent=1 // pred_region
      %27 = dma.done [#allocation4], 128
    $region17: #{tpu_custom_call.1} parent=1 // pred_fallthru
      _
    %v28 = vld [vmem:[#allocation3] sm:$0xff]
    %v29 = vld [vmem:[%s1] sm:$0x1]
    %v31 = vlaneseq
    %v32 = vshrl.u32 %v31, 7
    %v33 = vsub.s32 0, %v32
    %v34 = vrot.slane %v29, %v33
    %v36 = vmul.f32 %v28, %v34
    %vm37 = vcmask 261120
    %v38 = vsel %vm37, %v36, 0.0
    %39 = vadd.xlane.f32.xlu0 %v38
    %v40 = vpop.xlane.xlu0 %39
    %s41 = sld [smem:[#allocation2]]
    %v42 = vstv %s41
    %v43 = vadd.f32 %v40, %v42
    %v45 = vlaneseq
    %v46 = vand.u32 %v45, 127
    %v47 = vlaneseq
    %v48 = vshrl.u32 %v47, 7
    %v49 = vsub.s32 %v46, %v48
    %v50 = vrot.slane %v43, %v49
    %vm52 = vcmask 57344
    %53 = vst.msk [vmem:[#allocation6] sm:$0x1] %vm52, %v50
    // Predicated region
    $region18: #{tpu_custom_call.1} parent=1 // pred_check
      _
    $region19: #{tpu_custom_call.1} parent=1 // pred_check_branch
      %55 = sbr.rel (0) target = $region21
    $region20: #{tpu_custom_call.1} parent=1 // pred_region
      %s57 = ssub.s32 16, 16
      %58 = vsyncadd [#allocation5], %s57
      %s60 = sshll.u32 [#allocation6], 4
      %s61 = int_to_ptr.vmem [resolvable:$true] %s60
      %63 = dma.vmem_to_hbm [thread:$0]  %s61, 16, %s3, [#allocation5]
    $region21: #{tpu_custom_call.1} parent=1 // pred_fallthru
      _
    // Predicated region
    $region22: #{tpu_custom_call.1} parent=1 // pred_check
      _
    $region23: #{tpu_custom_call.1} parent=1 // pred_check_branch
      %65 = sbr.rel (0) target = $region25
    $region24: #{tpu_custom_call.1} parent=1 // pred_region
      %66 = dma.done [#allocation5], 16
    $region25: #{tpu_custom_call.1} parent=1 // pred_fallthru
      _
    %67 = vsyncpa [#allocation4], 1
    %68 = vsyncpa [#allocation5], 1

</llo_original>
